<compile_context>
chip_gen: v5e
topology: v5e:2x2
jax: 0.10.0
libtpu: 0.0.40
codegen_flags: <defaults>
</compile_context>

<pallas_src>
import functools

import jax
import jax.numpy as jnp
from jax.experimental import pallas as pl
from jax.experimental.pallas import tpu as pltpu


_DEFAULT_TILE_N = 8192   # points per grid step (multiple of 128, lane-aligned)


def _rdr_sparse_kernel(sp_ref, feat_ref, idx_ref,
                       *, x_min, y_min, z_min, grid_size):
    """One (1, C, TN) channel-major tile of the sparse radar cube.

    sp_ref  : (1, C, TN) float32  input tile (row 0 = x, 1 = y, 2 = z, ...)
    feat_ref: (1, 4, TN) float32  rows = [x, y, z, x]  (== cat(xyz, col 0))
    idx_ref : (1, 4, TN) int32    rows = [batch, z_ind, y_ind, x_ind]
    """
    tn = sp_ref.shape[-1]

    x = sp_ref[0, 0:1, :]                      # (1, TN)
    y = sp_ref[0, 1:2, :]
    z = sp_ref[0, 2:3, :]

    # Features: cat(xyz, sp[:, :3:4]) == cat(xyz, sp[:, :4:5]) == cat(xyz, x).
    # Faithful to the PyTorch slicing quirk — both extra columns are column 0.
    feat_ref[0, 0:3, :] = sp_ref[0, 0:3, :]
    feat_ref[0, 3:4, :] = x

    # TODO(synk): torch uses int64 (`.long()`) indices; TPU Pallas emits int32.
    z_ind = jnp.ceil((z - z_min) / grid_size).astype(jnp.int32)
    y_ind = jnp.ceil((y - y_min) / grid_size).astype(jnp.int32)
    x_ind = jnp.ceil((x - x_min) / grid_size).astype(jnp.int32)
    b_row = jnp.full((1, tn), pl.program_id(0), dtype=jnp.int32)

    idx_ref[0, 0:1, :] = b_row
    idx_ref[0, 1:2, :] = z_ind
    idx_ref[0, 2:3, :] = y_ind
    idx_ref[0, 3:4, :] = x_ind


def radar_sparse_processor_dop(sp_cube, *, roi, grid_size, tile_n=None):
    """JAX/Pallas equivalent of RadarSparseProcessorDop.forward (quantile path).

    sp_cube: (B, N, C) float32, C >= 3 (x, y, z, power, doppler, ...).
    Returns dict with:
      'sp_features_pw'  : (B*N, 4) float32
      'sp_features_dop' : (B*N, 4) float32  (identical to pw, as in the module)
      'sp_indices'      : (B*N, 4) int32    [batch, z_ind, y_ind, x_ind]
    """
    B, N, C = sp_cube.shape
    x_min = float(roi['x'][0])
    y_min = float(roi['y'][0])
    z_min = float(roi['z'][0])

    sp_cube = sp_cube.astype(jnp.float32)
    # Channel-major: put the (large) point axis N on the 128-lane axis so the
    # kernel's loads/stores are lane-dense.
    sp_t = jnp.transpose(sp_cube, (0, 2, 1))           # (B, C, N)

    if tile_n is None:
        tile_n = _DEFAULT_TILE_N
    tile_n = min(tile_n, N)
    grid = (B, pl.cdiv(N, tile_n))                     # partial last tile OK

    kernel = functools.partial(
        _rdr_sparse_kernel,
        x_min=x_min, y_min=y_min, z_min=z_min, grid_size=float(grid_size))

    in_spec = pl.BlockSpec((1, C, tile_n), lambda b, n: (b, 0, n))
    out_spec = pl.BlockSpec((1, 4, tile_n), lambda b, n: (b, 0, n))

    feats_t, idx_t = pl.pallas_call(
        kernel,
        out_shape=(
            jax.ShapeDtypeStruct((B, 4, N), jnp.float32),
            jax.ShapeDtypeStruct((B, 4, N), jnp.int32),
        ),
        grid_spec=pltpu.PrefetchScalarGridSpec(
            num_scalar_prefetch=0,
            grid=grid,
            in_specs=[in_spec],
            out_specs=[out_spec, out_spec],
        ),
        compiler_params=pltpu.CompilerParams(
            dimension_semantics=("parallel", "parallel")),
    )(sp_t)

    # Back to the PyTorch (B*N, 4) row-major layout expected by consumers.
    feats = jnp.transpose(feats_t, (0, 2, 1)).reshape(B * N, 4)
    indices = jnp.transpose(idx_t, (0, 2, 1)).reshape(B * N, 4)

    # pw and dop are provably identical (both cat(xyz, column 0)) — alias them
    # instead of writing a second, identical output stream from the kernel.
    return {
        'sp_features_pw': feats,
        'sp_features_dop': feats,
        'sp_indices': indices,
    }


def _reference(sp_cube, *, roi, grid_size):
    """Pure-JAX reference mirroring the PyTorch code line by line."""
    B, N, C = sp_cube.shape
    x_min, y_min, z_min = roi['x'][0], roi['y'][0], roi['z'][0]
    sp = sp_cube.reshape(B * N, C)
    xyz = sp[:, :3]
    pw = sp[:, :3:4]     # column 0 (as in the PyTorch module)
    dop = sp[:, :4:5]    # column 0 (as in the PyTorch module)
    x_c, y_c, z_c = sp[:, 0:1], sp[:, 1:2], sp[:, 2:3]
    z_i = jnp.ceil((z_c - z_min) / grid_size).astype(jnp.int32)
    y_i = jnp.ceil((y_c - y_min) / grid_size).astype(jnp.int32)
    x_i = jnp.ceil((x_c - x_min) / grid_size).astype(jnp.int32)
    b_i = jnp.repeat(jnp.arange(B, dtype=jnp.int32), N)[:, None]
    return {
        'sp_features_pw': jnp.concatenate([xyz, pw], axis=1),
        'sp_features_dop': jnp.concatenate([xyz, dop], axis=1),
        'sp_indices': jnp.concatenate([b_i, z_i, y_i, x_i], axis=-1),
    }


if __name__ == "__main__":
    # Synthetic config (cfg.DATASET.RDR_SP_CUBE.{ROI, GRID_SIZE, METHOD='quantile'})
    roi = {'x': (-16.0, 16.0), 'y': (-16.0, 16.0), 'z': (-2.0, 6.0)}
    grid_size = 0.4

    B, N, C = 2, 512, 5  # small shapes: (batch, points, [x, y, z, pw, dop])
    key = jax.random.PRNGKey(0)
    kx, ky, kz, kr = jax.random.split(key, 4)
    x = jax.random.uniform(kx, (B, N, 1), minval=-15.0, maxval=15.0)
    y = jax.random.uniform(ky, (B, N, 1), minval=-15.0, maxval=15.0)
    z = jax.random.uniform(kz, (B, N, 1), minval=-1.5, maxval=5.5)
    rest = jax.random.normal(kr, (B, N, C - 3))
    sp_cube = jnp.concatenate([x, y, z, rest], axis=-1).astype(jnp.float32)

    ref = _reference(sp_cube, roi=roi, grid_size=grid_size)

    # 1) Default tiling (single tile per batch at this small N).
    out = radar_sparse_processor_dop(sp_cube, roi=roi, grid_size=grid_size)
    jax.block_until_ready(out)
    assert jnp.allclose(out['sp_features_pw'], ref['sp_features_pw'])
    assert jnp.allclose(out['sp_features_dop'], ref['sp_features_dop'])
    assert jnp.array_equal(out['sp_indices'], ref['sp_indices'])

    # 2) Explicit small tile to exercise the multi-tile (B, N//tile_n) grid.
    out2 = radar_sparse_processor_dop(sp_cube, roi=roi, grid_size=grid_size,
                                      tile_n=128)
    jax.block_until_ready(out2)
    assert jnp.allclose(out2['sp_features_pw'], ref['sp_features_pw'])
    assert jnp.allclose(out2['sp_features_dop'], ref['sp_features_dop'])
    assert jnp.array_equal(out2['sp_indices'], ref['sp_indices'])

    print("KERNEL_OK")
</pallas_src>

<mosaic_0001>
module attributes {stable_mosaic.version = 11 : i64} {
  func.func @_rdr_sparse_kernel(%arg0: i32, %arg1: i32, %arg2: memref<1x5x512xf32, #tpu.memory_space<vmem>>, %arg3: memref<1x4x512xf32, #tpu.memory_space<vmem>>, %arg4: memref<1x4x512xi32, #tpu.memory_space<vmem>>) attributes {dimension_semantics = [#tpu.dimension_semantics<parallel>, #tpu.dimension_semantics<parallel>], iteration_bounds = array<i64: 2, 1>, scalar_prefetch = 0 : i64, scratch_operands = 0 : i64, tpu.core_type = #tpu.core_type<tc>, window_params = [{transform_indices = @transform_0, window_bounds = array<i64: 1, 5, 512>}, {transform_indices = @transform_1, window_bounds = array<i64: 1, 4, 512>}, {transform_indices = @transform_2, window_bounds = array<i64: 1, 4, 512>}]} {
    %c0 = arith.constant 0 : index
    %c0_0 = arith.constant 0 : index
    %c0_1 = arith.constant 0 : index
    %0 = vector.load %arg2[%c0, %c0_0, %c0_1] : memref<1x5x512xf32, #tpu.memory_space<vmem>>, vector<1x1x512xf32>
    %1 = vector.shape_cast %0 : vector<1x1x512xf32> to vector<1x512xf32>
    %c0_2 = arith.constant 0 : index
    %c1 = arith.constant 1 : index
    %c0_3 = arith.constant 0 : index
    %2 = vector.load %arg2[%c0_2, %c1, %c0_3] : memref<1x5x512xf32, #tpu.memory_space<vmem>>, vector<1x1x512xf32>
    %3 = vector.shape_cast %2 : vector<1x1x512xf32> to vector<1x512xf32>
    %c0_4 = arith.constant 0 : index
    %c2 = arith.constant 2 : index
    %c0_5 = arith.constant 0 : index
    %4 = vector.load %arg2[%c0_4, %c2, %c0_5] : memref<1x5x512xf32, #tpu.memory_space<vmem>>, vector<1x1x512xf32>
    %5 = vector.shape_cast %4 : vector<1x1x512xf32> to vector<1x512xf32>
    %c0_6 = arith.constant 0 : index
    %c0_7 = arith.constant 0 : index
    %c0_8 = arith.constant 0 : index
    %6 = vector.load %arg2[%c0_6, %c0_7, %c0_8] : memref<1x5x512xf32, #tpu.memory_space<vmem>>, vector<1x3x512xf32>
    %7 = vector.shape_cast %6 : vector<1x3x512xf32> to vector<3x512xf32>
    %c0_9 = arith.constant 0 : index
    %c0_10 = arith.constant 0 : index
    %c0_11 = arith.constant 0 : index
    %8 = vector.load %arg3[%c0_9, %c0_10, %c0_11] : memref<1x4x512xf32, #tpu.memory_space<vmem>>, vector<1x3x512xf32>
    %9 = vector.shape_cast %8 : vector<1x3x512xf32> to vector<3x512xf32>
    %10 = vector.shape_cast %7 : vector<3x512xf32> to vector<1x3x512xf32>
    tpu.vector_store %arg3[%c0_9, %c0_10, %c0_11], %10 {strides = array<i32>} : memref<1x4x512xf32, #tpu.memory_space<vmem>>, vector<1x3x512xf32>,
    %c0_12 = arith.constant 0 : index
    %c3 = arith.constant 3 : index
    %c0_13 = arith.constant 0 : index
    %11 = vector.load %arg3[%c0_12, %c3, %c0_13] : memref<1x4x512xf32, #tpu.memory_space<vmem>>, vector<1x1x512xf32>
    %12 = vector.shape_cast %11 : vector<1x1x512xf32> to vector<1x512xf32>
    %13 = vector.shape_cast %1 : vector<1x512xf32> to vector<1x1x512xf32>
    tpu.vector_store %arg3[%c0_12, %c3, %c0_13], %13 {strides = array<i32>} : memref<1x4x512xf32, #tpu.memory_space<vmem>>, vector<1x1x512xf32>,
    %cst = arith.constant -2.000000e+00 : f32
    %14 = vector.broadcast %cst : f32 to vector<1x512xf32>
    %15 = arith.subf %5, %14 : vector<1x512xf32>
    %cst_14 = arith.constant 4.000000e-01 : f32
    %16 = vector.broadcast %cst_14 : f32 to vector<1x512xf32>
    %17 = arith.divf %15, %16 : vector<1x512xf32>
    %18 = math.ceil %17 : vector<1x512xf32>
    %19 = arith.fptosi %18 : vector<1x512xf32> to vector<1x512xi32>
    %cst_15 = arith.constant -1.600000e+01 : f32
    %20 = vector.broadcast %cst_15 : f32 to vector<1x512xf32>
    %21 = arith.subf %3, %20 : vector<1x512xf32>
    %cst_16 = arith.constant 4.000000e-01 : f32
    %22 = vector.broadcast %cst_16 : f32 to vector<1x512xf32>
    %23 = arith.divf %21, %22 : vector<1x512xf32>
    %24 = math.ceil %23 : vector<1x512xf32>
    %25 = arith.fptosi %24 : vector<1x512xf32> to vector<1x512xi32>
    %cst_17 = arith.constant -1.600000e+01 : f32
    %26 = vector.broadcast %cst_17 : f32 to vector<1x512xf32>
    %27 = arith.subf %1, %26 : vector<1x512xf32>
    %cst_18 = arith.constant 4.000000e-01 : f32
    %28 = vector.broadcast %cst_18 : f32 to vector<1x512xf32>
    %29 = arith.divf %27, %28 : vector<1x512xf32>
    %30 = math.ceil %29 : vector<1x512xf32>
    %31 = arith.fptosi %30 : vector<1x512xf32> to vector<1x512xi32>
    %32 = vector.broadcast %arg0 : i32 to vector<1x512xi32>
    %c0_19 = arith.constant 0 : index
    %c0_20 = arith.constant 0 : index
    %c0_21 = arith.constant 0 : index
    %33 = vector.load %arg4[%c0_19, %c0_20, %c0_21] : memref<1x4x512xi32, #tpu.memory_space<vmem>>, vector<1x1x512xi32>
    %34 = vector.shape_cast %33 : vector<1x1x512xi32> to vector<1x512xi32>
    %35 = vector.shape_cast %32 : vector<1x512xi32> to vector<1x1x512xi32>
    tpu.vector_store %arg4[%c0_19, %c0_20, %c0_21], %35 {strides = array<i32>} : memref<1x4x512xi32, #tpu.memory_space<vmem>>, vector<1x1x512xi32>,
    %c0_22 = arith.constant 0 : index
    %c1_23 = arith.constant 1 : index
    %c0_24 = arith.constant 0 : index
    %36 = vector.load %arg4[%c0_22, %c1_23, %c0_24] : memref<1x4x512xi32, #tpu.memory_space<vmem>>, vector<1x1x512xi32>
    %37 = vector.shape_cast %36 : vector<1x1x512xi32> to vector<1x512xi32>
    %38 = vector.shape_cast %19 : vector<1x512xi32> to vector<1x1x512xi32>
    tpu.vector_store %arg4[%c0_22, %c1_23, %c0_24], %38 {strides = array<i32>} : memref<1x4x512xi32, #tpu.memory_space<vmem>>, vector<1x1x512xi32>,
    %c0_25 = arith.constant 0 : index
    %c2_26 = arith.constant 2 : index
    %c0_27 = arith.constant 0 : index
    %39 = vector.load %arg4[%c0_25, %c2_26, %c0_27] : memref<1x4x512xi32, #tpu.memory_space<vmem>>, vector<1x1x512xi32>
    %40 = vector.shape_cast %39 : vector<1x1x512xi32> to vector<1x512xi32>
    %41 = vector.shape_cast %25 : vector<1x512xi32> to vector<1x1x512xi32>
    tpu.vector_store %arg4[%c0_25, %c2_26, %c0_27], %41 {strides = array<i32>} : memref<1x4x512xi32, #tpu.memory_space<vmem>>, vector<1x1x512xi32>,
    %c0_28 = arith.constant 0 : index
    %c3_29 = arith.constant 3 : index
    %c0_30 = arith.constant 0 : index
    %42 = vector.load %arg4[%c0_28, %c3_29, %c0_30] : memref<1x4x512xi32, #tpu.memory_space<vmem>>, vector<1x1x512xi32>
    %43 = vector.shape_cast %42 : vector<1x1x512xi32> to vector<1x512xi32>
    %44 = vector.shape_cast %31 : vector<1x512xi32> to vector<1x1x512xi32>
    tpu.vector_store %arg4[%c0_28, %c3_29, %c0_30], %44 {strides = array<i32>} : memref<1x4x512xi32, #tpu.memory_space<vmem>>, vector<1x1x512xi32>,
    return
  }
  func.func @transform_0(%arg0: i32, %arg1: i32) -> (i32, i32, i32) {
    %c0_i32 = arith.constant 0 : i32
    %c0_i32_0 = arith.constant 0 : i32
    return %arg0, %c0_i32, %arg1 : i32, i32, i32
  }
  func.func @transform_1(%arg0: i32, %arg1: i32) -> (i32, i32, i32) {
    %c0_i32 = arith.constant 0 : i32
    %c0_i32_0 = arith.constant 0 : i32
    return %arg0, %c0_i32, %arg1 : i32, i32, i32
  }
  func.func @transform_2(%arg0: i32, %arg1: i32) -> (i32, i32, i32) {
    %c0_i32 = arith.constant 0 : i32
    %c0_i32_0 = arith.constant 0 : i32
    return %arg0, %c0_i32, %arg1 : i32, i32, i32
  }
}

</mosaic_0001>

<llo_original>
// kernel: tpu_custom_call.1
$region0: #{tpu_custom_call.1}
  #allocation0 [shape = 'u32[]', space=smem, size = 0x4, offset = 0x4, fixed_abs, tag = 'smem constant byte address 0x4 - core index']
  #allocation1 [shape = 'u32[72,128]{1,0:T(1,128)}', space=vmem, size = 0x9000, scoped, tag = 'internal scratch']
  %s0 = inlined_call_operand.vmem [shape: f32[2,5,512], index: 0, kind: input, shape index: {}]
  %s1 = inlined_call_operand.hbm [shape: f32[2,4,512], index: 1, kind: output, shape index: {0}]
  %s2 = inlined_call_operand.hbm [shape: s32[2,4,512], index: 2, kind: output, shape index: {1}]
  %3 = xla_tuple %s1, %s2
  %s4 = sld [smem:[#allocation0]]
  $region45: #{tpu_custom_call.1} parent=0
    _
  %s6 = ssub.s32 1, %s4
  %s7 = scalar_select 0, %s6, %s4
  $region1: #{tpu_custom_call.1} parent=0
    #allocation2 [shape = 'u8[16384]{0}', space=vmem, size = 0x4000, scoped, tag = 'output window, operand 0']
    #allocation3 [shape = 's32[2]{0}', space=sflag, size = 0x8, scoped, tag = 'scoped memory for tpu_custom_call.1']
    #allocation4 [shape = 'u8[16384]{0}', space=vmem, size = 0x4000, scoped, tag = 'output window, operand 1']
    #allocation5 [shape = 's32[2]{0}', space=sflag, size = 0x8, scoped, tag = 'scoped memory for tpu_custom_call.1']
    %8 = vsyncpa [#allocation3], 0
    %s9 = scalar_lea.sflag [#allocation3], 1
    %10 = vsyncpa %s9, 0
    %11 = vsyncpa [#allocation5], 0
    %s12 = scalar_lea.sflag [#allocation5], 1
    %13 = vsyncpa %s12, 0
    loop: start=0, step=1, limit=4
    $region2: #{tpu_custom_call.1} parent=1 // loop_pre_header
      _
    $region3: #{tpu_custom_call.1} parent=1 // loop_header
      %s15 = sphi 0, %s19
      %p16 = scmp.ge.s32.totalorder %s15, 4
      %s22 = sphi 0, %s34
      %s23 = sphi 0, %s30
      %s24 = sphi 0, %s22
      %s25 = sphi 0, %s23
      %s26 = sphi 0, %s24
      %s27 = sphi 0, %s25
      %s39 = sphi 0, %s41
      %s42 = sphi 0, %s39
      %s43 = sphi 0, %s42
      %s59 = sphi 0, %s43
      %s67 = sphi 0, %s69
      %s70 = sphi 0, %s67
      %s71 = sphi 0, %s70
      %s87 = sphi 0, %s71
      %s95 = sphi 0, %s97
      %s98 = sphi 0, %s95
      %s99 = sphi 0, %s98
      %s115 = sphi 0, %s99
    $region4: #{tpu_custom_call.1} parent=1 // loop_header_branch
      %18 = sbr.rel (%p16) target = $region8
    $region5: #{tpu_custom_call.1} parent=1 // loop_body
      %s20 = ssub.s32 %s15, 1
      %s21 = ssub.s32 %s15, 2
      %s28 = sadd.s32 1, %s23
      %p29 = scmp.ge.s32.totalorder %s28, 1
      %s30 = scalar_select %p29, 0, %s28
      %s31 = sadd.s32 1, %s22
      %s32 = scalar_select %p29, %s31, %s22
      %p33 = scmp.ge.s32.totalorder %s32, 2
      %s34 = scalar_select %p33, 0, %s32
      %s35 = ssub.s32 %s22, %s34
      %s36 = ssub.s32 %s23, %s30
      %s37 = sor.u32 %s35, %s36
      %p38 = scmp.eq.s32.totalorder %s37, 0
      %s40 = sadd.s32 %s39, 1
      %s41 = scalar_select %p38, %s39, %s40
      %p44 = pneg %p38
      %p45 = scmp.eq.s32.totalorder %s15, 1
      %p46 = por %p44, %p45
      %p47 = scmp.ne.s32.totalorder %s39, %s42
      %p48 = scmp.eq.s32.totalorder %s15, 0
      %p49 = por %p47, %p48
      %p50 = scmp.ne.s32.totalorder %s39, %s42
      %p51 = scmp.eq.s32.totalorder %s20, 1
      %p52 = por %p50, %p51
      %p53 = scmp.ne.s32.totalorder %s42, %s43
      %p54 = scmp.eq.s32.totalorder %s20, 0
      %p55 = por %p53, %p54
      %p56 = scmp.ne.s32.totalorder %s42, %s43
      %p57 = scmp.eq.s32.totalorder %s21, 1
      %p58 = por %p56, %p57
      %p60 = scmp.ne.s32.totalorder %s43, %s59
      %p61 = scmp.eq.s32.totalorder %s21, 0
      %p62 = por %p60, %p61
      %s63 = ssub.s32 %s22, %s34
      %s64 = ssub.s32 %s23, %s30
      %s65 = sor.u32 %s63, %s64
      %p66 = scmp.eq.s32.totalorder %s65, 0
      %s68 = sadd.s32 %s67, 1
      %s69 = scalar_select %p66, %s67, %s68
      %p72 = pneg %p66
      %p73 = scmp.eq.s32.totalorder %s15, 1
      %p74 = por %p72, %p73
      %p75 = scmp.ne.s32.totalorder %s67, %s70
      %p76 = scmp.eq.s32.totalorder %s15, 0
      %p77 = por %p75, %p76
      %p78 = scmp.ne.s32.totalorder %s67, %s70
      %p79 = scmp.eq.s32.totalorder %s20, 1
      %p80 = por %p78, %p79
      %p81 = scmp.ne.s32.totalorder %s70, %s71
      %p82 = scmp.eq.s32.totalorder %s20, 0
      %p83 = por %p81, %p82
      %p84 = scmp.ne.s32.totalorder %s70, %s71
      %p85 = scmp.eq.s32.totalorder %s21, 1
      %p86 = por %p84, %p85
      %p88 = scmp.ne.s32.totalorder %s71, %s87
      %p89 = scmp.eq.s32.totalorder %s21, 0
      %p90 = por %p88, %p89
      %s91 = ssub.s32 %s22, %s34
      %s92 = ssub.s32 %s23, %s30
      %s93 = sor.u32 %s91, %s92
      %p94 = scmp.eq.s32.totalorder %s93, 0
      %s96 = sadd.s32 %s95, 1
      %s97 = scalar_select %p94, %s95, %s96
      %p100 = pneg %p94
      %p101 = scmp.eq.s32.totalorder %s15, 1
      %p102 = por %p100, %p101
      %p103 = scmp.ne.s32.totalorder %s95, %s98
      %p104 = scmp.eq.s32.totalorder %s15, 0
      %p105 = por %p103, %p104
      %p106 = scmp.ne.s32.totalorder %s95, %s98
      %p107 = scmp.eq.s32.totalorder %s20, 1
      %p108 = por %p106, %p107
      %p109 = scmp.ne.s32.totalorder %s98, %s99
      %p110 = scmp.eq.s32.totalorder %s20, 0
      %p111 = por %p109, %p110
      %p112 = scmp.ne.s32.totalorder %s98, %s99
      %p113 = scmp.eq.s32.totalorder %s21, 1
      %p114 = por %p112, %p113
      %p116 = scmp.ne.s32.totalorder %s99, %s115
      %p117 = scmp.eq.s32.totalorder %s21, 0
      %p118 = por %p116, %p117
      %p119 = scmp.le.s32.totalorder 1, %s15
      %p120 = scmp.lt.s32.totalorder %s15, 3
      %p121 = pnand %p119, %p120
      %p122 = pneg %p121
      // Predicated region
      $region9: #{tpu_custom_call.1} parent=5 // pred_check
        _
      $region10: #{tpu_custom_call.1} parent=5 // pred_check_branch
        %124 = sbr.rel (%p121) target = $region12
      $region11: #{tpu_custom_call.1} parent=5 // pred_region
        %s125 = ssub.s32 %s15, 1
      $region12: #{tpu_custom_call.1} parent=5 // pred_fallthru
        _
      %p126 = scmp.lt.s32.totalorder %s15, 2
      // Predicated region
      $region13: #{tpu_custom_call.1} parent=5 // pred_check
        %p127 = pneg %p126
      $region14: #{tpu_custom_call.1} parent=5 // pred_check_branch
        %129 = sbr.rel (%p127) target = $region16
      $region15: #{tpu_custom_call.1} parent=5 // pred_region
        // Predicated region
        $region17: #{tpu_custom_call.1} parent=15 // pred_check
          %p130 = pneg %p49
        $region18: #{tpu_custom_call.1} parent=15 // pred_check_branch
          %132 = sbr.rel (%p130) target = $region20
        $region19: #{tpu_custom_call.1} parent=15 // pred_region
          %s133 = smul.u32 4, %s23
          %p134 = scmp.lt.s32.totalorder %s22, 1
          %s135 = scalar_select %p134, %s22, 1
          %p136 = scmp.lt.s32.totalorder %s133, 3
          %s137 = scalar_select %p136, %s133, 3
          %s138 = smul.addr %s135, 4
          %s139 = sadd.s32 %s137, %s138
          %s140 = smul.addr %s139, 8
          %s141 = scalar_lea.vmem %s0, %s140
          %s142 = smul.u32 4, %s23
        $region20: #{tpu_custom_call.1} parent=15 // pred_fallthru
          _
      $region16: #{tpu_custom_call.1} parent=5 // pred_fallthru
        _
      %p143 = scmp.le.s32.totalorder 1, %s15
      %p144 = scmp.lt.s32.totalorder %s15, 3
      %p145 = pnand %p143, %p144
      %p146 = pneg %p145
      // Predicated region
      $region21: #{tpu_custom_call.1} parent=5 // pred_check
        _
      $region22: #{tpu_custom_call.1} parent=5 // pred_check_branch
        %148 = sbr.rel (%p145) target = $region24
      $region23: #{tpu_custom_call.1} parent=5 // pred_region
        %s149 = ssub.s32 %s15, 1
        %s150 = smul.u32 4, %s25
        %p151 = scmp.lt.s32.totalorder %s24, 1
        %s152 = scalar_select %p151, %s24, 1
        %p153 = scmp.lt.s32.totalorder %s150, 3
        %s154 = scalar_select %p153, %s150, 3
        %s155 = smul.addr %s152, 4
        %s156 = sadd.s32 %s154, %s155
        %s157 = smul.addr %s156, 8
        %s158 = scalar_lea.vmem %s0, %s157
        %p159 = pneg %p55
        %p160 = pneg %p52
        %p161 = pneg %p83
        %p162 = pneg %p80
        %s163 = sand.u32 %s70, 1
        %s164 = scalar_lea.sflag [#allocation3], %s163
        %s165 = sand.u32 %s70, 1
        %s166 = smul.addr %s165, 16
        %s167 = scalar_lea.vmem [#allocation2], %s166
        %p168 = pneg %p111
        %p169 = pneg %p108
        %s170 = sand.u32 %s98, 1
        %s171 = scalar_lea.sflag [#allocation5], %s170
        %s172 = sand.u32 %s98, 1
        %s173 = smul.addr %s172, 16
        %s174 = scalar_lea.vmem [#allocation4], %s173
        %s175 = smul.u32 4, %s25
        %p176 = scmp.lt.s32.totalorder %s24, 1
        %s177 = scalar_select %p176, %s24, 1
        %p178 = scmp.lt.s32.totalorder %s175, 3
        %s179 = scalar_select %p178, %s175, 3
        %s180 = smul.addr %s177, 4
        %s181 = sadd.s32 %s179, %s180
        %s182 = smul.addr %s181, 8
        %s183 = scalar_lea.vmem %s0, %s182
        %s184 = smul.u32 4, %s25
        %s185 = smul.u32 4, %s25
        %s186 = smul.u32 4, %s25
        %v187 = vld [vmem:[%s183] ss:$8 sm:$0xf]
        %s188 = scalar_lea.vmem %s183, 1
        %v189 = vld [vmem:[%s188] ss:$8 sm:$0xf]
        %s190 = scalar_lea.vmem %s183, 2
        %v191 = vld [vmem:[%s190] ss:$8 sm:$0xf]
        %v192 = vld [vmem:[%s183] sm:$0x7]
        %v193 = vld [vmem:[%s183 + $0x8] sm:$0x7]
        %v194 = vld [vmem:[%s183 + $0x10] sm:$0x7]
        %v195 = vld [vmem:[%s183 + $0x18] sm:$0x7]
        %v200 = vrot.slane %v193, 4
        %v201 = vrot.slane %v195, 4
        %vm202 = vcmask 1043456
        %v203 = vsel %vm202, %v192, %v200
        %v204 = vsel %vm202, %v194, %v201
        %207 = vst [vmem:[%s167] sm:$0x77] %v203
        %208 = vst [vmem:[%s167 + $0x8] sm:$0x77] %v204
        %v209 = vlaneseq
        %vm210 = vcmp.ge.s32.totalorder %v209, 0
        %vm211 = vcmp.lt.s32.totalorder %v209, 512
        %vm212 = vmand %vm210, %vm211
        %s213 = scalar_lea.vmem %s167, 3 [#allocation2]
        %214 = vst.msk [vmem:[%s213] ss:$4 sm:$0xf] %vm212, %v187
        %v215 = vsub.f32 %v191, -2.0
        %v216 = vrcp.pop 0.4
        %v217 = vmul.f32 0.4, %v216
        %v218 = vsub.f32 1.0, %v217
        %v219 = vmul.f32 %v216, %v218
        %v220 = vadd.f32 %v216, %v219
        %vm221 = vweird.f32 %v216
        %v222 = vsel %vm221, %v216, %v220
        %v223 = vmul.f32 %v215, %v222
        %v224 = vceil.f32 %v223
        %v225 = vcvt.f32.s32.to.zero.pseudo %v224
        %v226 = vsub.f32 %v189, -16.0
        %v227 = vmul.f32 %v226, %v222
        %v228 = vceil.f32 %v227
        %v229 = vcvt.f32.s32.to.zero.pseudo %v228
        %v230 = vsub.f32 %v187, -16.0
        %v231 = vmul.f32 %v230, %v222
        %v232 = vceil.f32 %v231
        %v233 = vcvt.f32.s32.to.zero.pseudo %v232
        %v234 = vstv %s24
        %235 = vst.msk [vmem:[%s174] ss:$4 sm:$0xf] %vm212, %v234
        %s236 = scalar_lea.vmem %s174, 1 [#allocation4]
        %237 = vst.msk [vmem:[%s236] ss:$4 sm:$0xf] %vm212, %v225
        %s238 = scalar_lea.vmem %s174, 2 [#allocation4]
        %239 = vst.msk [vmem:[%s238] ss:$4 sm:$0xf] %vm212, %v229
        %s240 = scalar_lea.vmem %s174, 3 [#allocation4]
        %241 = vst.msk [vmem:[%s240] ss:$4 sm:$0xf] %vm212, %v233
        %s242 = sand.u32 %s70, 1
        %s243 = scalar_lea.sflag [#allocation3], %s242
        %s244 = sand.u32 %s70, 1
        %s245 = smul.addr %s244, 16
        %s246 = scalar_lea.vmem [#allocation2], %s245
        %s247 = sand.u32 %s98, 1
        %s248 = scalar_lea.sflag [#allocation5], %s247
        %s249 = sand.u32 %s98, 1
        %s250 = smul.addr %s249, 16
        %s251 = scalar_lea.vmem [#allocation4], %s250
        // Predicated region
        $region25: #{tpu_custom_call.1} parent=23 // pred_check
          %p252 = pneg %p80
        $region26: #{tpu_custom_call.1} parent=23 // pred_check_branch
          %254 = sbr.rel (%p252) target = $region28
        $region27: #{tpu_custom_call.1} parent=23 // pred_region
          %s255 = smul.u32 4, %s25
          %257 = vsyncadd %s243, 0
          %s258 = smul.addr %s24, 4
          %s259 = sadd.s32 %s255, %s258
          %s260 = smul.addr %s259, 4
          %s261 = scalar_lea.hbm %s1, %s260
          %s263 = sshll.u32 %s246, 4
          %s264 = int_to_ptr.vmem [resolvable:$true] %s263
          %s265 = sshll.u32 %s261, 4
          %s266 = int_to_ptr.hbm [resolvable:$true] %s265
          %268 = dma.vmem_to_hbm [thread:$0]  %s264, 256, %s266, %s243
        $region28: #{tpu_custom_call.1} parent=23 // pred_fallthru
          _
        // Predicated region
        $region29: #{tpu_custom_call.1} parent=23 // pred_check
          %p269 = pneg %p108
        $region30: #{tpu_custom_call.1} parent=23 // pred_check_branch
          %271 = sbr.rel (%p269) target = $region32
        $region31: #{tpu_custom_call.1} parent=23 // pred_region
          %s272 = smul.u32 4, %s25
          %274 = vsyncadd %s248, 0
          %s275 = smul.addr %s24, 4
          %s276 = sadd.s32 %s272, %s275
          %s277 = smul.addr %s276, 4
          %s278 = scalar_lea.hbm %s2, %s277
          %s280 = sshll.u32 %s251, 4
          %s281 = int_to_ptr.vmem [resolvable:$true] %s280
          %s282 = sshll.u32 %s278, 4
          %s283 = int_to_ptr.hbm [resolvable:$true] %s282
          %285 = dma.vmem_to_hbm [thread:$0]  %s281, 256, %s283, %s248
        $region32: #{tpu_custom_call.1} parent=23 // pred_fallthru
          _
      $region24: #{tpu_custom_call.1} parent=5 // pred_fallthru
        _
      %p286 = scmp.le.s32.totalorder 2, %s15
      // Predicated region
      $region33: #{tpu_custom_call.1} parent=5 // pred_check
        %p287 = pneg %p286
      $region34: #{tpu_custom_call.1} parent=5 // pred_check_branch
        %289 = sbr.rel (%p287) target = $region36
      $region35: #{tpu_custom_call.1} parent=5 // pred_region
        %s290 = ssub.s32 %s15, 2
        // Predicated region
        $region37: #{tpu_custom_call.1} parent=35 // pred_check
          %p291 = pneg %p86
        $region38: #{tpu_custom_call.1} parent=35 // pred_check_branch
          %293 = sbr.rel (%p291) target = $region40
        $region39: #{tpu_custom_call.1} parent=35 // pred_region
          %s294 = sand.u32 %s71, 1
          %s295 = scalar_lea.sflag [#allocation3], %s294
          %s296 = sand.u32 %s71, 1
          %s297 = smul.addr %s296, 16
          %s298 = scalar_lea.vmem [#allocation2], %s297
          %300 = dma.done %s295, 256
        $region40: #{tpu_custom_call.1} parent=35 // pred_fallthru
          _
        // Predicated region
        $region41: #{tpu_custom_call.1} parent=35 // pred_check
          %p301 = pneg %p114
        $region42: #{tpu_custom_call.1} parent=35 // pred_check_branch
          %303 = sbr.rel (%p301) target = $region44
        $region43: #{tpu_custom_call.1} parent=35 // pred_region
          %s304 = sand.u32 %s99, 1
          %s305 = scalar_lea.sflag [#allocation5], %s304
          %s306 = sand.u32 %s99, 1
          %s307 = smul.addr %s306, 16
          %s308 = scalar_lea.vmem [#allocation4], %s307
          %310 = dma.done %s305, 256
        $region44: #{tpu_custom_call.1} parent=35 // pred_fallthru
          _
      $region36: #{tpu_custom_call.1} parent=5 // pred_fallthru
        _
    $region6: #{tpu_custom_call.1} parent=1 // loop_footer
      %s19 = sadd.s32 1, %s15
    $region7: #{tpu_custom_call.1} parent=1 // loop_footer_branch
      %14 = sbr.rel target = $region3
    $region8: #{tpu_custom_call.1} parent=1 // loop_exit
      _
    %311 = vsyncpa [#allocation3], 1
    %s312 = scalar_lea.sflag [#allocation3], 1
    %313 = vsyncpa %s312, 1
    %314 = vsyncpa [#allocation5], 1
    %s315 = scalar_lea.sflag [#allocation5], 1
    %316 = vsyncpa %s315, 1

</llo_original>
